<compile_context>
chip_gen: v5e
topology: v5e:2x2
jax: 0.10.0
libtpu: 0.0.40
codegen_flags: <defaults>
</compile_context>

<pallas_src>
import functools

import jax
import jax.numpy as jnp
from jax.experimental import pallas as pl
from jax.experimental.pallas import tpu as pltpu


def _patch_embedding_kernel(x_ref, w_ref, b_ref, out_ref):
    # x_ref: (TM, K)   w_ref: (K, N)   b_ref: (1, N)   out_ref: (TM, N)
    acc = jnp.dot(x_ref[...], w_ref[...], preferred_element_type=jnp.float32)
    out_ref[...] = (acc + b_ref[...]).astype(out_ref.dtype)


@functools.partial(jax.jit, static_argnames=("patch_size", "block_m"))
def patch_embedding_forward(fmap, weight, bias, *, patch_size, block_m=1024):
    """fmap: (B, L, J*P, C). weight: (D_out, P*C) (PyTorch Linear layout).
    bias: (D_out,).  Returns (B, L, J, D_out)."""
    B, L, JP, C = fmap.shape
    P = patch_size
    assert JP % P == 0
    J = JP // P
    K = P * C
    N = weight.shape[0]
    assert weight.shape == (N, K)

    # Fold the rearrange '(joint patch) c -> joint (c patch)' into the weight:
    #   rearranged[c*P + p] == flat[p*C + c]
    #   => W_perm[:, p*C + c] = W[:, c*P + p]
    # so the kernel consumes a pure reshape of fmap (no in-kernel transpose).
    w_perm = weight.reshape(N, C, P).transpose(0, 2, 1).reshape(N, K)
    w_t = w_perm.T.astype(fmap.dtype)               # (K, N), contraction-major
    b2 = bias.reshape(1, N).astype(jnp.float32)

    # Flatten all (b, l, joint) rows into one big M dimension.
    x2d = fmap.reshape(B * L * J, K)                # pure reshape, contiguous
    M = x2d.shape[0]

    # Pick the M tile: one big block if everything fits, else block_m rows.
    m_pad = ((M + 7) // 8) * 8                      # sublane multiple
    if m_pad <= block_m:
        tm = m_pad
    else:
        tm = block_m
        m_pad = ((M + tm - 1) // tm) * tm
    if m_pad != M:
        x2d = jnp.pad(x2d, ((0, m_pad - M), (0, 0)))
    grid = (m_pad // tm,)

    out = pl.pallas_call(
        _patch_embedding_kernel,
        out_shape=jax.ShapeDtypeStruct((m_pad, N), fmap.dtype),
        grid_spec=pltpu.PrefetchScalarGridSpec(
            num_scalar_prefetch=0,
            grid=grid,
            in_specs=[
                pl.BlockSpec((tm, K), lambda i: (i, 0)),   # activations tile
                pl.BlockSpec((K, N), lambda i: (0, 0)),    # weight (resident)
                pl.BlockSpec((1, N), lambda i: (0, 0)),    # bias   (resident)
            ],
            out_specs=pl.BlockSpec((tm, N), lambda i: (i, 0)),
        ),
        compiler_params=pltpu.CompilerParams(
            dimension_semantics=("parallel",),
            vmem_limit_bytes=64 << 20,
        ),
    )(x2d, w_t, b2)

    return out[:M].reshape(B, L, J, N)


def patch_embedding_reference(fmap, weight, bias, patch_size):
    """Pure-JAX reference mirroring the PyTorch module exactly."""
    B, L, JP, C = fmap.shape
    P = patch_size
    J = JP // P
    x = fmap.reshape(B, L, J, P, C)                 # (joint, patch, c)
    x = jnp.transpose(x, (0, 1, 2, 4, 3))           # -> (joint, c, patch)
    x = x.reshape(B, L, J, C * P)                   # 'joint (c patch)'
    return x @ weight.T + bias


if __name__ == "__main__":
    # shapes implied by the module: batch=2, len=4, joints=4, patch_size=4,
    # dim(c)=16 -> joint*patch=16, in_features=64, dim_out=32.
    B, L, J, P, C, D_OUT = 2, 4, 4, 4, 16, 32

    key = jax.random.PRNGKey(0)
    k1, k2, k3 = jax.random.split(key, 3)
    fmap = jax.random.normal(k1, (B, L, J * P, C), dtype=jnp.float32)
    weight = (0.05 * jax.random.normal(k2, (D_OUT, P * C))).astype(jnp.float32)
    bias = (0.05 * jax.random.normal(k3, (D_OUT,))).astype(jnp.float32)

    out = patch_embedding_forward(fmap, weight, bias, patch_size=P)
    out = jax.block_until_ready(out)
    assert out.shape == (B, L, J, D_OUT), out.shape

    ref = patch_embedding_reference(fmap, weight, bias, P)
    err = float(jnp.max(jnp.abs(out - ref)))
    assert err < 1e-4, f"kernel vs reference mismatch: max abs err {err}"

    print("KERNEL_OK")
</pallas_src>

<mosaic_0001>
module attributes {stable_mosaic.version = 11 : i64} {
  func.func @_patch_embedding_kernel(%arg0: i32, %arg1: memref<32x64xf32, #tpu.memory_space<vmem>>, %arg2: memref<64x32xf32, #tpu.memory_space<vmem>>, %arg3: memref<1x32xf32, #tpu.memory_space<vmem>>, %arg4: memref<32x32xf32, #tpu.memory_space<vmem>>) attributes {dimension_semantics = [#tpu.dimension_semantics<parallel>], iteration_bounds = array<i64: 1>, scalar_prefetch = 0 : i64, scratch_operands = 0 : i64, tpu.core_type = #tpu.core_type<tc>, window_params = [{transform_indices = @transform_0, window_bounds = array<i64: 32, 64>}, {pipeline_mode = #tpu.pipeline_mode<synchronous>, transform_indices = @transform_1, window_bounds = array<i64: 64, 32>}, {pipeline_mode = #tpu.pipeline_mode<synchronous>, transform_indices = @transform_2, window_bounds = array<i64: 1, 32>}, {transform_indices = @transform_3, window_bounds = array<i64: 32, 32>}]} {
    %c0 = arith.constant 0 : index
    %c0_0 = arith.constant 0 : index
    %0 = vector.load %arg1[%c0, %c0_0] : memref<32x64xf32, #tpu.memory_space<vmem>>, vector<32x64xf32>
    %c0_1 = arith.constant 0 : index
    %c0_2 = arith.constant 0 : index
    %1 = vector.load %arg2[%c0_1, %c0_2] : memref<64x32xf32, #tpu.memory_space<vmem>>, vector<64x32xf32>
    %cst = arith.constant dense<0.000000e+00> : vector<32x32xf32>
    %2 = tpu.matmul %0, %1, %cst {dimension_numbers = #tpu.dot_dimension_numbers<[1], [0], [0], [1], [0, 0, 1, 1], [], []>} : vector<32x64xf32>, vector<64x32xf32>, vector<32x32xf32> -> vector<32x32xf32>
    %c0_3 = arith.constant 0 : index
    %c0_4 = arith.constant 0 : index
    %3 = vector.load %arg3[%c0_3, %c0_4] : memref<1x32xf32, #tpu.memory_space<vmem>>, vector<1x32xf32>
    %4 = vector.broadcast %3 : vector<1x32xf32> to vector<32x32xf32>
    %5 = arith.addf %2, %4 : vector<32x32xf32>
    %c0_5 = arith.constant 0 : index
    %c0_6 = arith.constant 0 : index
    %6 = vector.load %arg4[%c0_5, %c0_6] : memref<32x32xf32, #tpu.memory_space<vmem>>, vector<32x32xf32>
    tpu.vector_store %arg4[%c0_5, %c0_6], %5 {strides = array<i32>} : memref<32x32xf32, #tpu.memory_space<vmem>>, vector<32x32xf32>,
    return
  }
  func.func @transform_0(%arg0: i32) -> (i32, i32) {
    %c0_i32 = arith.constant 0 : i32
    %c0_i32_0 = arith.constant 0 : i32
    return %arg0, %c0_i32 : i32, i32
  }
  func.func @transform_1(%arg0: i32) -> (i32, i32) {
    %c0_i32 = arith.constant 0 : i32
    %c0_i32_0 = arith.constant 0 : i32
    %c0_i32_1 = arith.constant 0 : i32
    return %c0_i32, %c0_i32_0 : i32, i32
  }
  func.func @transform_2(%arg0: i32) -> (i32, i32) {
    %c0_i32 = arith.constant 0 : i32
    %c0_i32_0 = arith.constant 0 : i32
    %c0_i32_1 = arith.constant 0 : i32
    return %c0_i32, %c0_i32_0 : i32, i32
  }
  func.func @transform_3(%arg0: i32) -> (i32, i32) {
    %c0_i32 = arith.constant 0 : i32
    %c0_i32_0 = arith.constant 0 : i32
    return %arg0, %c0_i32 : i32, i32
  }
}

</mosaic_0001>

<llo_original>
// kernel: patch_embedding_forward.1
$region0: #{patch_embedding_forward.1}
  #allocation0 [shape = 'u32[]', space=smem, size = 0x4, offset = 0x4, fixed_abs, tag = 'smem constant byte address 0x4 - core index']
  #allocation1 [shape = 'u32[72,128]{1,0:T(1,128)}', space=vmem, size = 0x9000, scoped, tag = 'internal scratch']
  %s0 = inlined_call_operand.vmem [shape: f32[32,64], index: 0, kind: input, shape index: {}]
  %s1 = inlined_call_operand.vmem [shape: f32[64,32], index: 1, kind: input, shape index: {}]
  %s2 = inlined_call_operand.vmem [shape: f32[1,32], index: 2, kind: input, shape index: {}]
  %s3 = inlined_call_operand.hbm [shape: f32[32,32], index: 3, kind: output, shape index: {}]
  %s4 = sld [smem:[#allocation0]]
  $region22: #{patch_embedding_forward.1} parent=0
    _
  %s6 = ssub.s32 1, %s4
  %s7 = scalar_select 0, %s6, %s4
  $region1: #{patch_embedding_forward.1} parent=0
    #allocation2 [shape = 'u8[16384]{0}', space=vmem, size = 0x4000, scoped, tag = 'output window, operand 0, single buffered']
    #allocation3 [shape = 's32[1]{0}', space=sflag, size = 0x4, scoped, tag = 'scoped memory for patch_embedding_forward.1']
    %8 = vsyncpa [#allocation3], 0
    // Predicated region
    $region2: #{patch_embedding_forward.1} parent=1 // pred_check
      _
    $region3: #{patch_embedding_forward.1} parent=1 // pred_check_branch
      %10 = sbr.rel (0) target = $region5
    $region4: #{patch_embedding_forward.1} parent=1 // pred_region
      _
    $region5: #{patch_embedding_forward.1} parent=1 // pred_fallthru
      _
    // Predicated region
    $region6: #{patch_embedding_forward.1} parent=1 // pred_check
      _
    $region7: #{patch_embedding_forward.1} parent=1 // pred_check_branch
      %12 = sbr.rel (0) target = $region9
    $region8: #{patch_embedding_forward.1} parent=1 // pred_region
      _
    $region9: #{patch_embedding_forward.1} parent=1 // pred_fallthru
      _
    // Predicated region
    $region10: #{patch_embedding_forward.1} parent=1 // pred_check
      _
    $region11: #{patch_embedding_forward.1} parent=1 // pred_check_branch
      %14 = sbr.rel (0) target = $region13
    $region12: #{patch_embedding_forward.1} parent=1 // pred_region
      _
    $region13: #{patch_embedding_forward.1} parent=1 // pred_fallthru
      _
    %v15 = vld [vmem:[%s0] sm:$0xff]
    %v16 = vld [vmem:[%s0 + $0x8] sm:$0xff]
    %v17 = vld [vmem:[%s0 + $0x10] sm:$0xff]
    %v18 = vld [vmem:[%s0 + $0x18] sm:$0xff]
    %v19 = vld [vmem:[%s1] sm:$0xff]
    %v20 = vld [vmem:[%s1 + $0x8] sm:$0xff]
    %v21 = vld [vmem:[%s1 + $0x10] sm:$0xff]
    %v22 = vld [vmem:[%s1 + $0x18] sm:$0xff]
    %v23 = vld [vmem:[%s1 + $0x20] sm:$0xff]
    %v24 = vld [vmem:[%s1 + $0x28] sm:$0xff]
    %v25 = vld [vmem:[%s1 + $0x30] sm:$0xff]
    %v26 = vld [vmem:[%s1 + $0x38] sm:$0xff]
    %v27 = vld [vmem:[%s2] sm:$0x1]
    %v29 = vperm.slane %v27, 0
    %vm31 = vcmask 523264
    %v33 = vsel %vm31, %v15, 0
    %v36 = vsel %vm31, %v16, 0
    %v39 = vsel %vm31, %v17, 0
    %v42 = vsel %vm31, %v18, 0
    %44 = vmatpush.msra.mxu0 0.0
    %45 = vmatpush.msra.mxu0 0.0
    %46 = vmatpush.msra.mxu0 0.0
    %47 = vmatpush.msra.mxu0 0.0
    %48 = vmatpush.msra.mxu0 0.0
    %49 = vmatpush.msra.mxu0 0.0
    %50 = vmatpush.msra.mxu0 0.0
    %51 = vmatpush.msra.mxu0 0.0
    %52 = vmatpush.msra.mxu0 %v26
    %53 = vmatpush.msra.mxu0 %v25
    %54 = vmatpush.msra.mxu0 %v24
    %55 = vmatpush.msra.mxu0 %v23
    %56 = vmatpush.msra.mxu0 %v22
    %57 = vmatpush.msra.mxu0 %v21
    %58 = vmatpush.msra.mxu0 %v20
    %59 = vmatpush.msra.mxu0 %v19
    %60 = vmatmul.f32.gmra.mxu0 %v33
    %v61 = vpop.f32.mrf.mxu0
    %v62 = vadd.f32 %v29, %v61
    %63 = vmatmul.f32.gmra.mxu0 %v36
    %v64 = vpop.f32.mrf.mxu0
    %v65 = vadd.f32 %v29, %v64
    %66 = vmatmul.f32.gmra.mxu0 %v39
    %v67 = vpop.f32.mrf.mxu0
    %v68 = vadd.f32 %v29, %v67
    %69 = vmatmul.f32.gmra.mxu0 %v42
    %v70 = vpop.f32.mrf.mxu0
    %v71 = vadd.f32 %v29, %v70
    %72 = vdwg.mxu0
    %vm73 = vcmask 261120
    %74 = vst.msk [vmem:[#allocation2] sm:$0xff] %vm73, %v62
    %75 = vst.msk [vmem:[#allocation2 + $0x8] sm:$0xff] %vm73, %v65
    %76 = vst.msk [vmem:[#allocation2 + $0x10] sm:$0xff] %vm73, %v68
    %77 = vst.msk [vmem:[#allocation2 + $0x18] sm:$0xff] %vm73, %v71
    // Predicated region
    $region14: #{patch_embedding_forward.1} parent=1 // pred_check
      _
    $region15: #{patch_embedding_forward.1} parent=1 // pred_check_branch
      %79 = sbr.rel (0) target = $region17
    $region16: #{patch_embedding_forward.1} parent=1 // pred_region
      %81 = vsyncadd [#allocation3], 0
      %s82 = sshll.u32 [#allocation2], 4
      %s83 = int_to_ptr.vmem [resolvable:$true] %s82
      %s84 = sshll.u32 %s3, 4
      %s85 = int_to_ptr.hbm [resolvable:$true] %s84
      %90 = dma.vmem_to_hbm [thread:$0]  %s83, 512, %s85, [#allocation3], 128, 128, 8
    $region17: #{patch_embedding_forward.1} parent=1 // pred_fallthru
      _
    // Predicated region
    $region18: #{patch_embedding_forward.1} parent=1 // pred_check
      _
    $region19: #{patch_embedding_forward.1} parent=1 // pred_check_branch
      %92 = sbr.rel (0) target = $region21
    $region20: #{patch_embedding_forward.1} parent=1 // pred_region
      %94 = dma.done [#allocation3], 512
    $region21: #{patch_embedding_forward.1} parent=1 // pred_fallthru
      _
    %95 = vsyncpa [#allocation3], 1

</llo_original>
